<compile_context>
chip_gen: v7x
topology: tpu7x:2x2x1
jax: 0.10.0
libtpu: 0.0.40
codegen_flags: <defaults>
</compile_context>

<pallas_src>
import jax
import jax.numpy as jnp
import numpy as np
from jax.experimental import pallas as pl
from jax.experimental.pallas import tpu as pltpu


def se_kernel(x_ref, w1_ref, w2t_ref, o_ref):
    # x_ref:   (B_blk, C, HW)
    # w1_ref:  (hid, C)  -- first Linear weight, PyTorch (out, in) layout
    # w2t_ref: (hid, C)  -- second Linear weight, transposed so C is lane-major
    x = x_ref[...]
    xf32 = x.astype(jnp.float32)

    # --- Squeeze: adaptive avg pool == spatial mean over HW (lane reduce). ---
    pooled = jnp.mean(xf32, axis=2)                               # (B_blk, C)

    # --- Excite on the VPU/XLU (shapes far too small for the MXU). ---
    # h[b, j] = relu( sum_c pooled[b, c] * w1[j, c] )
    h = jnp.sum(pooled[:, None, :] * w1_ref[...][None, :, :], axis=2)  # (B_blk, hid)
    h = jnp.maximum(h, 0.0)
    # y[b, c] = sigmoid( sum_j h[b, j] * w2t[j, c] )   (C stays on lanes)
    y = jnp.sum(h[:, :, None] * w2t_ref[...][None, :, :], axis=1)      # (B_blk, C)
    y = jax.nn.sigmoid(y)

    # --- Rescale: broadcast the per-channel gate over the spatial lane axis. ---
    o_ref[...] = (xf32 * y[:, :, None]).astype(o_ref.dtype)


def se_layer_4_vision(x, w1, w2, *, num_blocks=None):
    """x: (B, C, H, W); w1: (C//r, C); w2: (C, C//r)  (PyTorch Linear layouts)."""
    b, c, h, w = x.shape
    hw = h * w
    hid = w1.shape[0]

    if num_blocks is None:
        # <=2 grid steps: lets v7x's two TensorCores each take half the batch
        # while keeping per-step overhead negligible on single-TC v5e/v6e.
        num_blocks = 2 if (b % 2 == 0 and b >= 2) else 1
    b_blk = b // num_blocks

    xf = x.reshape(b, c, hw)
    w2t = w2.T  # (hid, C): lane-major layout for the in-kernel excite path

    out = pl.pallas_call(
        se_kernel,
        out_shape=jax.ShapeDtypeStruct((b, c, hw), x.dtype),
        grid_spec=pltpu.PrefetchScalarGridSpec(
            num_scalar_prefetch=0,
            grid=(num_blocks,),
            in_specs=[
                pl.BlockSpec((b_blk, c, hw), lambda i: (i, 0, 0)),
                pl.BlockSpec((hid, c), lambda i: (0, 0)),
                pl.BlockSpec((hid, c), lambda i: (0, 0)),
            ],
            out_specs=pl.BlockSpec((b_blk, c, hw), lambda i: (i, 0, 0)),
        ),
        input_output_aliases={0: 0},  # x is dead after the rescale
        compiler_params=pltpu.CompilerParams(
            dimension_semantics=("parallel",)),
    )(xf, w1, w2t)
    return out.reshape(b, c, h, w)


def reference(x, w1, w2):
    # Pure-JAX reference matching the PyTorch forward.
    y = jnp.mean(x, axis=(2, 3))                      # (B, C)
    y = jnp.maximum(y @ w1.T, 0.0)                    # (B, C//r)
    y = jax.nn.sigmoid(y @ w2.T)                      # (B, C)
    return x * y[:, :, None, None]


if __name__ == "__main__":
    B, C, H, W = 2, 32, 16, 16
    reduction = 16
    hid = C // reduction

    key = jax.random.PRNGKey(0)
    kx, k1, k2 = jax.random.split(key, 3)
    x = jax.random.normal(kx, (B, C, H, W), dtype=jnp.float32)
    # Deterministic "Linear(bias=False)" weights, PyTorch layout (out, in).
    w1 = jax.random.normal(k1, (hid, C), dtype=jnp.float32) * 0.1
    w2 = jax.random.normal(k2, (C, hid), dtype=jnp.float32) * 0.1

    # Compute the reference first (the kernel aliases x's flattened copy).
    ref = reference(x, w1, w2)
    ref = jax.block_until_ready(ref)

    out = se_layer_4_vision(x, w1, w2)
    out = jax.block_until_ready(out)

    np.testing.assert_allclose(np.asarray(out), np.asarray(ref),
                               rtol=1e-5, atol=1e-5)
    print("KERNEL_OK")
</pallas_src>

<mosaic_0001>
module attributes {stable_mosaic.version = 11 : i64} {
  func.func @se_kernel(%arg0: i32, %arg1: memref<1x32x256xf32, #tpu.memory_space<vmem>>, %arg2: memref<2x32xf32, #tpu.memory_space<vmem>>, %arg3: memref<2x32xf32, #tpu.memory_space<vmem>>, %arg4: memref<1x32x256xf32, #tpu.memory_space<vmem>>) attributes {dimension_semantics = [#tpu.dimension_semantics<parallel>], iteration_bounds = array<i64: 2>, scalar_prefetch = 0 : i64, scratch_operands = 0 : i64, tpu.core_type = #tpu.core_type<tc>, window_params = [{transform_indices = @transform_0, window_bounds = array<i64: 1, 32, 256>}, {pipeline_mode = #tpu.pipeline_mode<synchronous>, transform_indices = @transform_1, window_bounds = array<i64: 2, 32>}, {pipeline_mode = #tpu.pipeline_mode<synchronous>, transform_indices = @transform_2, window_bounds = array<i64: 2, 32>}, {transform_indices = @transform_3, window_bounds = array<i64: 1, 32, 256>}]} {
    %c0 = arith.constant 0 : index
    %c0_0 = arith.constant 0 : index
    %c0_1 = arith.constant 0 : index
    %0 = vector.load %arg1[%c0, %c0_0, %c0_1] : memref<1x32x256xf32, #tpu.memory_space<vmem>>, vector<1x32x256xf32>
    %cst = arith.constant dense<0.000000e+00> : vector<1x32xf32>
    %1 = vector.multi_reduction <add>, %0, %cst [2] : vector<1x32x256xf32> to vector<1x32xf32>
    %cst_2 = arith.constant 2.560000e+02 : f32
    %2 = vector.broadcast %cst_2 : f32 to vector<1x32xf32>
    %3 = arith.divf %1, %2 : vector<1x32xf32>
    %4 = vector.shape_cast %3 : vector<1x32xf32> to vector<1x1x32xf32>
    %c0_3 = arith.constant 0 : index
    %c0_4 = arith.constant 0 : index
    %5 = vector.load %arg2[%c0_3, %c0_4] : memref<2x32xf32, #tpu.memory_space<vmem>>, vector<2x32xf32>
    %6 = vector.shape_cast %5 : vector<2x32xf32> to vector<1x2x32xf32>
    %7 = vector.broadcast %4 : vector<1x1x32xf32> to vector<1x2x32xf32>
    %8 = arith.mulf %7, %6 : vector<1x2x32xf32>
    %cst_5 = arith.constant dense<0.000000e+00> : vector<1x2xf32>
    %9 = vector.multi_reduction <add>, %8, %cst_5 [2] : vector<1x2x32xf32> to vector<1x2xf32>
    %cst_6 = arith.constant 0.000000e+00 : f32
    %10 = vector.broadcast %cst_6 : f32 to vector<1x2xf32>
    %11 = arith.maximumf %9, %10 : vector<1x2xf32>
    %12 = vector.shape_cast %11 : vector<1x2xf32> to vector<1x2x1xf32>
    %c0_7 = arith.constant 0 : index
    %c0_8 = arith.constant 0 : index
    %13 = vector.load %arg3[%c0_7, %c0_8] : memref<2x32xf32, #tpu.memory_space<vmem>>, vector<2x32xf32>
    %14 = vector.shape_cast %13 : vector<2x32xf32> to vector<1x2x32xf32>
    %15 = vector.broadcast %12 : vector<1x2x1xf32> to vector<1x2x32xf32>
    %16 = arith.mulf %15, %14 : vector<1x2x32xf32>
    %cst_9 = arith.constant dense<0.000000e+00> : vector<1x32xf32>
    %17 = vector.multi_reduction <add>, %16, %cst_9 [1] : vector<1x2x32xf32> to vector<1x32xf32>
    %18 = arith.negf %17 : vector<1x32xf32>
    %19 = math.exp %18 : vector<1x32xf32>
    %cst_10 = arith.constant 1.000000e+00 : f32
    %20 = vector.broadcast %cst_10 : f32 to vector<1x32xf32>
    %21 = arith.addf %20, %19 : vector<1x32xf32>
    %22 = arith.divf %20, %21 : vector<1x32xf32>
    %23 = vector.shape_cast %22 : vector<1x32xf32> to vector<1x32x1xf32>
    %24 = vector.broadcast %23 : vector<1x32x1xf32> to vector<1x32x256xf32>
    %25 = arith.mulf %0, %24 : vector<1x32x256xf32>
    %c0_11 = arith.constant 0 : index
    %c0_12 = arith.constant 0 : index
    %c0_13 = arith.constant 0 : index
    %26 = vector.load %arg4[%c0_11, %c0_12, %c0_13] : memref<1x32x256xf32, #tpu.memory_space<vmem>>, vector<1x32x256xf32>
    tpu.vector_store %arg4[%c0_11, %c0_12, %c0_13], %25 {strides = array<i32>} : memref<1x32x256xf32, #tpu.memory_space<vmem>>, vector<1x32x256xf32>,
    return
  }
  func.func @transform_0(%arg0: i32) -> (i32, i32, i32) {
    %c0_i32 = arith.constant 0 : i32
    %c0_i32_0 = arith.constant 0 : i32
    %c0_i32_1 = arith.constant 0 : i32
    return %arg0, %c0_i32, %c0_i32_0 : i32, i32, i32
  }
  func.func @transform_1(%arg0: i32) -> (i32, i32) {
    %c0_i32 = arith.constant 0 : i32
    %c0_i32_0 = arith.constant 0 : i32
    %c0_i32_1 = arith.constant 0 : i32
    return %c0_i32, %c0_i32_0 : i32, i32
  }
  func.func @transform_2(%arg0: i32) -> (i32, i32) {
    %c0_i32 = arith.constant 0 : i32
    %c0_i32_0 = arith.constant 0 : i32
    %c0_i32_1 = arith.constant 0 : i32
    return %c0_i32, %c0_i32_0 : i32, i32
  }
  func.func @transform_3(%arg0: i32) -> (i32, i32, i32) {
    %c0_i32 = arith.constant 0 : i32
    %c0_i32_0 = arith.constant 0 : i32
    %c0_i32_1 = arith.constant 0 : i32
    return %arg0, %c0_i32, %c0_i32_0 : i32, i32, i32
  }
}

</mosaic_0001>

<llo_original>
// kernel: tpu_custom_call.1
$region0: #{tpu_custom_call.1}
  #allocation0 [shape = 'u32[]', space=smem, size = 0x4, offset = 0x4, fixed_abs, tag = 'smem constant byte address 0x4 - core index']
  #allocation1 [shape = 'u32[144,128]{1,0:T(1,128)}', space=vmem, size = 0x12000, scoped, tag = 'internal scratch']
  %s0 = inlined_call_operand.hbm [shape: f32[2,32,256], index: 0, kind: input, shape index: {}, may-alias: {0,3}]
  %s1 = inlined_call_operand.vmem [shape: f32[2,32], index: 1, kind: input, shape index: {}]
  %s2 = inlined_call_operand.vmem [shape: f32[2,32], index: 2, kind: input, shape index: {}]
  %s3 = inlined_call_operand.hbm [shape: f32[2,32,256], index: 3, kind: output, shape index: {}, may-alias: {0,3}]
  %s4 = sld [smem:[#allocation0]]
  $region49: #{tpu_custom_call.1} parent=0
    _
  %s6 = ssub.s32 1, %s4
  %s7 = scalar_select 0, %s6, %s4
  $region1: #{tpu_custom_call.1} parent=0
    #allocation2 [shape = 'u8[65536]{0}', space=vmem, size = 0x10000, scoped, tag = 'input window, operand 0']
    #allocation3 [shape = 's32[2]{0}', space=sflag, size = 0x8, scoped, tag = 'scoped memory for tpu_custom_call.1']
    #allocation4 [shape = 's32[2]{0}', space=sflag, size = 0x8, scoped, tag = 'scoped memory for tpu_custom_call.1']
    #allocation5 [shape = 'u8[65536]{0}', space=vmem, size = 0x10000, scoped, tag = 'output window, operand 0']
    %8 = vsyncpa [#allocation3], 0
    %s9 = scalar_lea.sflag [#allocation3], 1
    %10 = vsyncpa %s9, 0
    %11 = vsyncpa [#allocation4], 0
    %s12 = scalar_lea.sflag [#allocation4], 1
    %13 = vsyncpa %s12, 0
    loop: start=0, step=1, limit=4
    $region2: #{tpu_custom_call.1} parent=1 // loop_pre_header
      _
    $region3: #{tpu_custom_call.1} parent=1 // loop_header
      %s15 = sphi 0, %s19
      %p16 = scmp.ge.s32.totalorder %s15, 4
      %s25 = sphi 0, %s27
      %s28 = sphi 0, %s25
      %s29 = sphi 0, %s28
      %s45 = sphi 0, %s29
      %s49 = sphi 0, %s49
      %s51 = sphi 0, %s49
      %s52 = sphi 0, %s51
      %s66 = sphi 0, %s52
      %s70 = sphi 0, %s70
      %s72 = sphi 0, %s70
      %s73 = sphi 0, %s72
      %s87 = sphi 0, %s73
      %s93 = sphi 0, %s95
      %s96 = sphi 0, %s93
      %s97 = sphi 0, %s96
      %s113 = sphi 0, %s97
    $region4: #{tpu_custom_call.1} parent=1 // loop_header_branch
      %18 = sbr.rel (%p16) target = $region8
    $region5: #{tpu_custom_call.1} parent=1 // loop_body
      %s20 = ssub.s32 %s15, 1
      %s21 = ssub.s32 %s15, 2
      %s22 = sadd.s32 %s15, 1
      %s23 = ssub.s32 %s15, %s22
      %p24 = scmp.eq.s32.totalorder %s23, 0
      %s26 = sadd.s32 %s25, 1
      %s27 = scalar_select %p24, %s25, %s26
      %p30 = pneg %p24
      %p31 = scmp.eq.s32.totalorder %s15, 1
      %p32 = por %p30, %p31
      %p33 = scmp.ne.s32.totalorder %s25, %s28
      %p34 = scmp.eq.s32.totalorder %s15, 0
      %p35 = por %p33, %p34
      %p36 = scmp.ne.s32.totalorder %s25, %s28
      %p37 = scmp.eq.s32.totalorder %s20, 1
      %p38 = por %p36, %p37
      %p39 = scmp.ne.s32.totalorder %s28, %s29
      %p40 = scmp.eq.s32.totalorder %s20, 0
      %p41 = por %p39, %p40
      %p42 = scmp.ne.s32.totalorder %s28, %s29
      %p43 = scmp.eq.s32.totalorder %s21, 1
      %p44 = por %p42, %p43
      %p46 = scmp.ne.s32.totalorder %s29, %s45
      %p47 = scmp.eq.s32.totalorder %s21, 0
      %p48 = por %p46, %p47
      %s50 = sadd.s32 %s49, 1
      %p53 = scmp.eq.s32.totalorder %s15, 1
      %p54 = scmp.ne.s32.totalorder %s49, %s51
      %p55 = scmp.eq.s32.totalorder %s15, 0
      %p56 = por %p54, %p55
      %p57 = scmp.ne.s32.totalorder %s49, %s51
      %p58 = scmp.eq.s32.totalorder %s20, 1
      %p59 = por %p57, %p58
      %p60 = scmp.ne.s32.totalorder %s51, %s52
      %p61 = scmp.eq.s32.totalorder %s20, 0
      %p62 = por %p60, %p61
      %p63 = scmp.ne.s32.totalorder %s51, %s52
      %p64 = scmp.eq.s32.totalorder %s21, 1
      %p65 = por %p63, %p64
      %p67 = scmp.ne.s32.totalorder %s52, %s66
      %p68 = scmp.eq.s32.totalorder %s21, 0
      %p69 = por %p67, %p68
      %s71 = sadd.s32 %s70, 1
      %p74 = scmp.eq.s32.totalorder %s15, 1
      %p75 = scmp.ne.s32.totalorder %s70, %s72
      %p76 = scmp.eq.s32.totalorder %s15, 0
      %p77 = por %p75, %p76
      %p78 = scmp.ne.s32.totalorder %s70, %s72
      %p79 = scmp.eq.s32.totalorder %s20, 1
      %p80 = por %p78, %p79
      %p81 = scmp.ne.s32.totalorder %s72, %s73
      %p82 = scmp.eq.s32.totalorder %s20, 0
      %p83 = por %p81, %p82
      %p84 = scmp.ne.s32.totalorder %s72, %s73
      %p85 = scmp.eq.s32.totalorder %s21, 1
      %p86 = por %p84, %p85
      %p88 = scmp.ne.s32.totalorder %s73, %s87
      %p89 = scmp.eq.s32.totalorder %s21, 0
      %p90 = por %p88, %p89
      %s91 = ssub.s32 %s15, %s22
      %p92 = scmp.eq.s32.totalorder %s91, 0
      %s94 = sadd.s32 %s93, 1
      %s95 = scalar_select %p92, %s93, %s94
      %p98 = pneg %p92
      %p99 = scmp.eq.s32.totalorder %s15, 1
      %p100 = por %p98, %p99
      %p101 = scmp.ne.s32.totalorder %s93, %s96
      %p102 = scmp.eq.s32.totalorder %s15, 0
      %p103 = por %p101, %p102
      %p104 = scmp.ne.s32.totalorder %s93, %s96
      %p105 = scmp.eq.s32.totalorder %s20, 1
      %p106 = por %p104, %p105
      %p107 = scmp.ne.s32.totalorder %s96, %s97
      %p108 = scmp.eq.s32.totalorder %s20, 0
      %p109 = por %p107, %p108
      %p110 = scmp.ne.s32.totalorder %s96, %s97
      %p111 = scmp.eq.s32.totalorder %s21, 1
      %p112 = por %p110, %p111
      %p114 = scmp.ne.s32.totalorder %s97, %s113
      %p115 = scmp.eq.s32.totalorder %s21, 0
      %p116 = por %p114, %p115
      %p117 = scmp.le.s32.totalorder 1, %s15
      %p118 = scmp.lt.s32.totalorder %s15, 3
      %p119 = pnand %p117, %p118
      %p120 = pneg %p119
      // Predicated region
      $region9: #{tpu_custom_call.1} parent=5 // pred_check
        _
      $region10: #{tpu_custom_call.1} parent=5 // pred_check_branch
        %122 = sbr.rel (%p119) target = $region12
      $region11: #{tpu_custom_call.1} parent=5 // pred_region
        %s123 = ssub.s32 %s15, 1
        // Predicated region
        $region13: #{tpu_custom_call.1} parent=11 // pred_check
          %p124 = pneg %p62
        $region14: #{tpu_custom_call.1} parent=11 // pred_check_branch
          %126 = sbr.rel (%p124) target = $region16
        $region15: #{tpu_custom_call.1} parent=11 // pred_region
          _
        $region16: #{tpu_custom_call.1} parent=11 // pred_fallthru
          _
        // Predicated region
        $region17: #{tpu_custom_call.1} parent=11 // pred_check
          %p127 = pneg %p83
        $region18: #{tpu_custom_call.1} parent=11 // pred_check_branch
          %129 = sbr.rel (%p127) target = $region20
        $region19: #{tpu_custom_call.1} parent=11 // pred_region
          _
        $region20: #{tpu_custom_call.1} parent=11 // pred_fallthru
          _
      $region12: #{tpu_custom_call.1} parent=5 // pred_fallthru
        _
      %p130 = scmp.lt.s32.totalorder %s15, 2
      // Predicated region
      $region21: #{tpu_custom_call.1} parent=5 // pred_check
        %p131 = pneg %p130
      $region22: #{tpu_custom_call.1} parent=5 // pred_check_branch
        %133 = sbr.rel (%p131) target = $region24
      $region23: #{tpu_custom_call.1} parent=5 // pred_region
        // Predicated region
        $region25: #{tpu_custom_call.1} parent=23 // pred_check
          %p134 = pneg %p35
        $region26: #{tpu_custom_call.1} parent=23 // pred_check_branch
          %136 = sbr.rel (%p134) target = $region28
        $region27: #{tpu_custom_call.1} parent=23 // pred_region
          %s137 = sand.u32 %s25, 1
          %s138 = scalar_lea.sflag [#allocation3], %s137
          %s139 = sand.u32 %s25, 1
          %s140 = smul.addr %s139, 64
          %s141 = scalar_lea.vmem [#allocation2], %s140
          %s143 = ssub.s32 1024, 1024
          %144 = vsyncadd %s138, %s143
          %s145 = smul.addr %s15, 8
          %s146 = smul.addr %s145, 128
          %s147 = scalar_lea.hbm %s0, %s146
          %s148 = sshll.u32 %s141, 4
          %s149 = int_to_ptr.vmem [resolvable:$true] %s148
          %154 = dma.hbm_to_vmem [thread:$0]  %s147, 1024, %s149, %s138, 256, 256, 16
        $region28: #{tpu_custom_call.1} parent=23 // pred_fallthru
          _
      $region24: #{tpu_custom_call.1} parent=5 // pred_fallthru
        _
      %p155 = scmp.le.s32.totalorder 1, %s15
      %p156 = scmp.lt.s32.totalorder %s15, 3
      %p157 = pnand %p155, %p156
      %p158 = pneg %p157
      // Predicated region
      $region29: #{tpu_custom_call.1} parent=5 // pred_check
        _
      $region30: #{tpu_custom_call.1} parent=5 // pred_check_branch
        %160 = sbr.rel (%p157) target = $region32
      $region31: #{tpu_custom_call.1} parent=5 // pred_region
        %s161 = ssub.s32 %s15, 1
        %s162 = sand.u32 %s28, 1
        %s163 = scalar_lea.sflag [#allocation3], %s162
        %s164 = sand.u32 %s28, 1
        %s165 = smul.addr %s164, 64
        %s166 = scalar_lea.vmem [#allocation2], %s165
        // Predicated region
        $region33: #{tpu_custom_call.1} parent=31 // pred_check
          %p167 = pneg %p41
        $region34: #{tpu_custom_call.1} parent=31 // pred_check_branch
          %169 = sbr.rel (%p167) target = $region36
        $region35: #{tpu_custom_call.1} parent=31 // pred_region
          %170 = dma.done %s163, 1024
        $region36: #{tpu_custom_call.1} parent=31 // pred_fallthru
          _
        %s171 = sand.u32 %s28, 1
        %s172 = scalar_lea.sflag [#allocation3], %s171
        %s173 = sand.u32 %s28, 1
        %s174 = smul.addr %s173, 64
        %s175 = scalar_lea.vmem [#allocation2], %s174
        %p176 = pneg %p41
        %p177 = pneg %p38
        %p178 = pneg %p62
        %p179 = pneg %p59
        %p180 = pneg %p83
        %p181 = pneg %p80
        %p182 = pneg %p109
        %p183 = pneg %p106
        %s184 = sand.u32 %s96, 1
        %s185 = scalar_lea.sflag [#allocation4], %s184
        %s186 = sand.u32 %s96, 1
        %s187 = smul.addr %s186, 64
        %s188 = scalar_lea.vmem [#allocation5], %s187
        %v189 = vld [vmem:[%s166] sm:$0xff]
        %v190 = vld [vmem:[%s166 + $0x8] sm:$0xff]
        %v191 = vld [vmem:[%s166 + $0x10] sm:$0xff]
        %v192 = vld [vmem:[%s166 + $0x18] sm:$0xff]
        %v193 = vld [vmem:[%s166 + $0x20] sm:$0xff]
        %v194 = vld [vmem:[%s166 + $0x28] sm:$0xff]
        %v195 = vld [vmem:[%s166 + $0x30] sm:$0xff]
        %v196 = vld [vmem:[%s166 + $0x38] sm:$0xff]
        %v197 = vadd.f32 %v189, %v190
        %198 = vadd.xlane.f32.xlu0 %v197
        %v199 = vpop.xlane.xlu0 %198
        %v200 = vadd.f32 %v191, %v192
        %201 = vadd.xlane.f32.xlu0 %v200
        %v202 = vpop.xlane.xlu0 %201
        %v203 = vadd.f32 %v193, %v194
        %204 = vadd.xlane.f32.xlu0 %v203
        %v205 = vpop.xlane.xlu0 %204
        %v206 = vadd.f32 %v195, %v196
        %207 = vadd.xlane.f32.xlu0 %v206
        %v208 = vpop.xlane.xlu0 %207
        %v209 = vrcp.pop 256.0
        %v210 = vmul.f32 %v199, %v209
        %v211 = vmul.f32 %v202, %v209
        %v212 = vmul.f32 %v205, %v209
        %v213 = vmul.f32 %v208, %v209
        %v214 = vld [vmem:[%s1] sm:$0x3]
        %v216 = vlaneseq
        %v217 = vshrl.u32 %v216, 7
        %v218 = vsub.s32 0, %v217
        %v219 = vrot.slane %v214, %v218
        %221 = vbcast.lane.b32.xlu0 %v219, 256
        %v222 = vpop.permute.xlu0 %221
        %s224 = sor.u32 256, 8
        %225 = vbcast.lane.b32.xlu0 %v219, %s224
        %v226 = vpop.permute.xlu0 %225
        %s228 = sor.u32 256, 16
        %229 = vbcast.lane.b32.xlu0 %v219, %s228
        %v230 = vpop.permute.xlu0 %229
        %s232 = sor.u32 256, 24
        %233 = vbcast.lane.b32.xlu0 %v219, %s232
        %v234 = vpop.permute.xlu0 %233
        %v235 = vlaneseq
        %v236 = vshrl.u32 %v235, 7
        %v237 = vsub.s32 1, %v236
        %v238 = vrot.slane %v214, %v237
        %240 = vbcast.lane.b32.xlu0 %v238, 256
        %v241 = vpop.permute.xlu0 %240
        %s243 = sor.u32 256, 8
        %244 = vbcast.lane.b32.xlu0 %v238, %s243
        %v245 = vpop.permute.xlu0 %244
        %s247 = sor.u32 256, 16
        %248 = vbcast.lane.b32.xlu0 %v238, %s247
        %v249 = vpop.permute.xlu0 %248
        %s251 = sor.u32 256, 24
        %252 = vbcast.lane.b32.xlu0 %v238, %s251
        %v253 = vpop.permute.xlu0 %252
        %v262 = vmul.f32 %v210, %v222
        %v263 = vmul.f32 %v211, %v226
        %v264 = vmul.f32 %v212, %v230
        %v265 = vmul.f32 %v213, %v234
        %v266 = vmul.f32 %v210, %v241
        %v267 = vmul.f32 %v211, %v245
        %v268 = vmul.f32 %v212, %v249
        %v269 = vmul.f32 %v213, %v253
        %278 = vset.pattern.permute.xlu0 0
        %279 = vperm.xlu0 %278, %v262
        %v280 = vpop.permute.xlu0 %279
        %281 = vset.pattern.permute.xlu0 0
        %282 = vperm.xlu0 %281, %v263
        %v283 = vpop.permute.xlu0 %282
        %284 = vset.pattern.permute.xlu0 0
        %285 = vperm.xlu0 %284, %v264
        %v286 = vpop.permute.xlu0 %285
        %287 = vset.pattern.permute.xlu0 0
        %288 = vperm.xlu0 %287, %v265
        %v289 = vpop.permute.xlu0 %288
        %290 = vset.pattern.permute.xlu0 0
        %291 = vperm.xlu0 %290, %v266
        %v292 = vpop.permute.xlu0 %291
        %293 = vset.pattern.permute.xlu0 0
        %294 = vperm.xlu0 %293, %v267
        %v295 = vpop.permute.xlu0 %294
        %296 = vset.pattern.permute.xlu0 0
        %297 = vperm.xlu0 %296, %v268
        %v298 = vpop.permute.xlu0 %297
        %299 = vset.pattern.permute.xlu0 0
        %300 = vperm.xlu0 %299, %v269
        %v301 = vpop.permute.xlu0 %300
        %v302 = vlaneseq
        %v303 = vand.u32 %v302, 127
        %v304 = vlaneseq
        %v305 = vshrl.u32 %v304, 7
        %v306 = vsub.s32 %v303, %v305
        %v307 = vrot.slane %v280, %v306
        %v308 = vadd.s32 %v303, 4294967288
        %v309 = vlaneseq
        %v310 = vshrl.u32 %v309, 7
        %v311 = vsub.s32 %v308, %v310
        %v312 = vrot.slane %v283, %v311
        %vm313 = vcmask 130112
        %v314 = vsel %vm313, %v312, %v307
        %v315 = vadd.s32 %v303, 4294967280
        %v316 = vlaneseq
        %v317 = vshrl.u32 %v316, 7
        %v318 = vsub.s32 %v315, %v317
        %v319 = vrot.slane %v286, %v318
        %vm320 = vcmask 195712
        %v321 = vsel %vm320, %v319, %v314
        %v322 = vadd.s32 %v303, 4294967272
        %v323 = vlaneseq
        %v324 = vshrl.u32 %v323, 7
        %v325 = vsub.s32 %v322, %v324
        %v326 = vrot.slane %v289, %v325
        %vm327 = vcmask 261312
        %v328 = vsel %vm327, %v326, %v321
        %v329 = vlaneseq
        %v330 = vshrl.u32 %v329, 7
        %v331 = vsub.s32 %v303, %v330
        %v332 = vrot.slane %v292, %v331
        %v333 = vlaneseq
        %v334 = vshrl.u32 %v333, 7
        %v335 = vsub.s32 %v308, %v334
        %v336 = vrot.slane %v295, %v335
        %v337 = vsel %vm313, %v336, %v332
        %v338 = vlaneseq
        %v339 = vshrl.u32 %v338, 7
        %v340 = vsub.s32 %v315, %v339
        %v341 = vrot.slane %v298, %v340
        %v342 = vsel %vm320, %v341, %v337
        %v343 = vlaneseq
        %v344 = vshrl.u32 %v343, 7
        %v345 = vsub.s32 %v322, %v344
        %v346 = vrot.slane %v301, %v345
        %v347 = vsel %vm327, %v346, %v342
        %vm348 = vcmask 1041409
        %v349 = vsel %vm348, %v347, %v328
        %vm351 = vcmask 254976
        %v352 = vsel %vm351, %v349, 0.0
        %353 = vadd.xlane.f32.xlu0 %v352
        %v354 = vpop.xlane.xlu0 %353
        %v355 = vmax.f32 %v354, 0.0
        %v356 = vld [vmem:[%s2] sm:$0x3]
        %v357 = vmul.f32 %v355, %v356
        %v358 = vsel %vm351, %v357, 0.0
        %v359 = vrot.slane %v358, 4
        %v360 = vadd.f32 %v358, %v359
        %v361 = vrot.slane %v360, 2
        %v362 = vadd.f32 %v360, %v361
        %v363 = vrot.slane %v362, 1
        %v364 = vadd.f32 %v362, %v363
        %v365 = vxor.u32 %v364, 2147483648
        %v366 = vmul.f32 %v365, 1.442695
        %v367 = vpow.pop %v366
        %v368 = vadd.f32 %v367, 1.0
        %v369 = vrcp.pop %v368
        %v370 = vmul.f32 1.0, %v369
        %372 = vbcast.lane.b32.xlu0 %v370, 256
        %v373 = vpop.permute.xlu0 %372
        %s375 = sor.u32 256, 8
        %376 = vbcast.lane.b32.xlu0 %v370, %s375
        %v377 = vpop.permute.xlu0 %376
        %s379 = sor.u32 256, 16
        %380 = vbcast.lane.b32.xlu0 %v370, %s379
        %v381 = vpop.permute.xlu0 %380
        %s383 = sor.u32 256, 24
        %384 = vbcast.lane.b32.xlu0 %v370, %s383
        %v385 = vpop.permute.xlu0 %384
        %v386 = vmul.f32 %v189, %v373
        %v387 = vmul.f32 %v190, %v373
        %v388 = vmul.f32 %v191, %v377
        %v389 = vmul.f32 %v192, %v377
        %v390 = vmul.f32 %v193, %v381
        %v391 = vmul.f32 %v194, %v381
        %v392 = vmul.f32 %v195, %v385
        %v393 = vmul.f32 %v196, %v385
        %394 = vst [vmem:[%s188] sm:$0xff] %v386
        %395 = vst [vmem:[%s188 + $0x8] sm:$0xff] %v387
        %396 = vst [vmem:[%s188 + $0x10] sm:$0xff] %v388
        %397 = vst [vmem:[%s188 + $0x18] sm:$0xff] %v389
        %398 = vst [vmem:[%s188 + $0x20] sm:$0xff] %v390
        %399 = vst [vmem:[%s188 + $0x28] sm:$0xff] %v391
        %400 = vst [vmem:[%s188 + $0x30] sm:$0xff] %v392
        %401 = vst [vmem:[%s188 + $0x38] sm:$0xff] %v393
        %s402 = sand.u32 %s96, 1
        %s403 = scalar_lea.sflag [#allocation4], %s402
        %s404 = sand.u32 %s96, 1
        %s405 = smul.addr %s404, 64
        %s406 = scalar_lea.vmem [#allocation5], %s405
        // Predicated region
        $region37: #{tpu_custom_call.1} parent=31 // pred_check
          %p407 = pneg %p106
        $region38: #{tpu_custom_call.1} parent=31 // pred_check_branch
          %409 = sbr.rel (%p407) target = $region40
        $region39: #{tpu_custom_call.1} parent=31 // pred_region
          %s411 = ssub.s32 1024, 1024
          %412 = vsyncadd %s403, %s411
          %s413 = smul.addr %s20, 8
          %s414 = smul.addr %s413, 128
          %s415 = scalar_lea.hbm %s3, %s414
          %s416 = sshll.u32 %s406, 4
          %s417 = int_to_ptr.vmem [resolvable:$true] %s416
          %422 = dma.vmem_to_hbm [thread:$0]  %s417, 1024, %s415, %s403, 256, 256, 16
        $region40: #{tpu_custom_call.1} parent=31 // pred_fallthru
          _
      $region32: #{tpu_custom_call.1} parent=5 // pred_fallthru
        _
      %p423 = scmp.le.s32.totalorder 2, %s15
      // Predicated region
      $region41: #{tpu_custom_call.1} parent=5 // pred_check
        %p424 = pneg %p423
      $region42: #{tpu_custom_call.1} parent=5 // pred_check_branch
        %426 = sbr.rel (%p424) target = $region44
      $region43: #{tpu_custom_call.1} parent=5 // pred_region
        %s427 = ssub.s32 %s15, 2
        // Predicated region
        $region45: #{tpu_custom_call.1} parent=43 // pred_check
          %p428 = pneg %p112
        $region46: #{tpu_custom_call.1} parent=43 // pred_check_branch
          %430 = sbr.rel (%p428) target = $region48
        $region47: #{tpu_custom_call.1} parent=43 // pred_region
          %s431 = sand.u32 %s97, 1
          %s432 = scalar_lea.sflag [#allocation4], %s431
          %s433 = sand.u32 %s97, 1
          %s434 = smul.addr %s433, 64
          %s435 = scalar_lea.vmem [#allocation5], %s434
          %436 = dma.done %s432, 1024
        $region48: #{tpu_custom_call.1} parent=43 // pred_fallthru
          _
      $region44: #{tpu_custom_call.1} parent=5 // pred_fallthru
        _
    $region6: #{tpu_custom_call.1} parent=1 // loop_footer
      %s19 = sadd.s32 1, %s15
    $region7: #{tpu_custom_call.1} parent=1 // loop_footer_branch
      %14 = sbr.rel target = $region3
    $region8: #{tpu_custom_call.1} parent=1 // loop_exit
      _
    %437 = vsyncpa [#allocation3], 1
    %s438 = scalar_lea.sflag [#allocation3], 1
    %439 = vsyncpa %s438, 1
    %440 = vsyncpa [#allocation4], 1
    %s441 = scalar_lea.sflag [#allocation4], 1
    %442 = vsyncpa %s441, 1

</llo_original>
